<compile_context>
chip_gen: v6e
topology: v6e:2x2x1
jax: 0.10.0
libtpu: 0.0.40
codegen_flags: <defaults>
</compile_context>

<pallas_src>
import jax
import jax.numpy as jnp
from jax.experimental import pallas as pl
from jax.experimental.pallas import tpu as pltpu

_LANE = 128


def _make_kernel(b_n, c_out, ch, n_chunks, rem):
    """Build the kernel for a (b_n, C_in, tl) input block.

    Kernel refs:
      x_ref : (b_n, C_in, tl)       input slice
      w_ref : (2*C_out, C_in)       linear-folded conv taps, tap-major rows
      b_ref : (2*C_out, 1)          linear-folded bias (same bias for both taps)
      se_ref: (ch, 2*ch)            tap-0 spread (source col j -> dest col 2j)
      so_ref: (ch, 2*ch)            tap-1 spread (source col j -> dest col 2j+1)
      o_ref : (b_n, C_out, 2*tl)    interleaved output slice
    """

    def kernel(x_ref, w_ref, b_ref, se_ref, so_ref, o_ref):
        w = w_ref[...]       # (2*C_out, C_in)
        bias = b_ref[...]    # (2*C_out, 1)
        se = se_ref[...]     # (ch, 2*ch)
        so = so_ref[...]     # (ch, 2*ch)

        def emit(b, col0, width, s_e, s_o):
            # One 128-wide (or tail-sized) chunk of one batch element.
            xs = x_ref[b, :, col0:col0 + width]                        # (C_in, w)
            z = jnp.dot(w, xs, preferred_element_type=jnp.float32) + bias
            # x2 = relu(x1) in the PyTorch forward is dead code -> skipped.
            oc = (jnp.dot(z[:c_out, :], s_e, preferred_element_type=jnp.float32)
                  + jnp.dot(z[c_out:, :], s_o, preferred_element_type=jnp.float32))
            o_ref[b, :, 2 * col0:2 * (col0 + width)] = oc.astype(o_ref.dtype)

        for b in range(b_n):                     # static unroll over batch block
            for c in range(n_chunks):            # static unroll over 128-col chunks
                emit(b, c * ch, ch, se, so)
            if rem > 0:                          # ragged tail chunk (static size)
                emit(b, n_chunks * ch, rem,
                     se_ref[:rem, :2 * rem], so_ref[:rem, :2 * rem])

    return kernel


def _pick_length_tile(length, cap=2048):
    """Length tile: full L if it fits under the cap, else the largest
    lane-aligned (multiple-of-128) tile <= cap that divides L; if no such
    divisor exists, fall back to the (lane-aligned) cap and let Pallas mask the
    ragged last block."""
    if length <= cap:
        return length
    cand = (cap // _LANE) * _LANE
    while cand >= _LANE:
        if length % cand == 0:
            return cand
        cand -= _LANE
    return (cap // _LANE) * _LANE


def model_forward(x, w_conv, b_conv, w_lin, b_lin, *, length_tile_cap=2048):
    """x: (N, C_in, L) f32.  w_conv: (C_in, C_out, K=2) (PyTorch ConvTranspose1d
    layout).  Returns (N, C_out, 2L) f32."""
    N, C_in, L = x.shape
    C_in_w, C_out, K = w_conv.shape
    assert C_in == C_in_w and K == 2, "kernel assumes ConvTranspose1d(k=2, stride=2)"

    # Fold the Linear layer into the conv-transpose taps and stack the taps:
    #   w_stack[k*C_out + o, i] = sum_c w_lin[o, c] * w_conv[i, c, k]
    w_stack = jnp.einsum('oc,ick->koi', w_lin, w_conv).reshape(K * C_out, C_in)
    w_stack = w_stack.astype(jnp.float32)
    b_eff = w_lin @ b_conv + b_lin                                   # (C_out,)
    b_stack = jnp.tile(b_eff, K).reshape(K * C_out, 1).astype(jnp.float32)

    # Length tiling and the chunk size used for the in-kernel interleave.
    tl = _pick_length_tile(L, length_tile_cap)
    num_l = pl.cdiv(L, tl)
    ch = tl if tl <= _LANE else _LANE
    n_chunks = tl // ch
    rem = tl - n_chunks * ch

    # Constant 0/1 spread matrices, built ONCE here and kept resident in VMEM
    # via a constant index_map (no per-step iota/compare/cast work).
    src = jnp.arange(ch, dtype=jnp.int32)[:, None]
    dst = jnp.arange(2 * ch, dtype=jnp.int32)[None, :]
    s_even = (dst == 2 * src).astype(jnp.float32)        # (ch, 2*ch)
    s_odd = (dst == 2 * src + 1).astype(jnp.float32)     # (ch, 2*ch)

    # Batch blocking: amortize per-step overhead, but keep >= 2 parallel grid
    # steps whenever N > 1 so both v7x TensorCores get work.
    b_n = min(N, 8)
    if num_l == 1 and N > 1 and pl.cdiv(N, b_n) < 2:
        b_n = max(1, (N + 1) // 2)
    grid_n = pl.cdiv(N, b_n)

    kernel = _make_kernel(b_n, C_out, ch, n_chunks, rem)

    out = pl.pallas_call(
        kernel,
        out_shape=jax.ShapeDtypeStruct((N, C_out, K * L), x.dtype),
        grid=(grid_n, num_l),
        in_specs=[
            pl.BlockSpec((b_n, C_in, tl), lambda n, j: (n, 0, j)),        # x
            pl.BlockSpec((K * C_out, C_in), lambda n, j: (0, 0)),         # w_stack
            pl.BlockSpec((K * C_out, 1), lambda n, j: (0, 0)),            # b_stack
            pl.BlockSpec((ch, 2 * ch), lambda n, j: (0, 0)),              # s_even
            pl.BlockSpec((ch, 2 * ch), lambda n, j: (0, 0)),              # s_odd
        ],
        out_specs=pl.BlockSpec((b_n, C_out, K * tl), lambda n, j: (n, 0, j)),
        compiler_params=pltpu.CompilerParams(
            dimension_semantics=("parallel", "parallel")),
    )(x, w_stack, b_stack, s_even, s_odd)
    return out


def reference_forward(x, w_conv, b_conv, w_lin, b_lin):
    """Pure-JAX reference (ConvTranspose1d stride=2,k=2 + channel-axis Linear)."""
    N, C_in, L = x.shape
    C_out, K = w_conv.shape[1], w_conv.shape[2]
    # y[n, o, j, k] = sum_c x[n, c, j] * w_conv[c, o, k]
    y = jnp.einsum('nci,cok->noik', x, w_conv) + b_conv[None, :, None, None]
    x1 = y.reshape(N, C_out, K * L)                        # interleave taps
    x3 = jnp.einsum('oc,ncl->nol', w_lin, x1) + b_lin[None, :, None]
    return x3


if __name__ == "__main__":
    key = jax.random.PRNGKey(0)
    k1, k2, k3, k4, k5 = jax.random.split(key, 5)

    N, C_in, C_out, K, L = 2, 2, 3, 2, 13

    x = jax.random.normal(k1, (N, C_in, L), dtype=jnp.float32)
    # ConvTranspose1d weight layout in PyTorch: (in_channels, out_channels, kernel)
    w_conv = jax.random.normal(k2, (C_in, C_out, K), dtype=jnp.float32) * 0.5
    b_conv = jax.random.normal(k3, (C_out,), dtype=jnp.float32) * 0.1
    w_lin = jax.random.normal(k4, (C_out, C_out), dtype=jnp.float32) * 0.5
    b_lin = jax.random.normal(k5, (C_out,), dtype=jnp.float32) * 0.1

    out = model_forward(x, w_conv, b_conv, w_lin, b_lin)
    out = jax.block_until_ready(out)

    ref = reference_forward(x, w_conv, b_conv, w_lin, b_lin)
    assert out.shape == (N, C_out, K * L), out.shape
    assert jnp.allclose(out, ref, atol=1e-5, rtol=1e-5), "mismatch vs reference"

    print("KERNEL_OK")
</pallas_src>

<mosaic_0001>
module attributes {stable_mosaic.version = 11 : i64} {
  func.func @kernel(%arg0: i32, %arg1: i32, %arg2: memref<1x2x13xf32, #tpu.memory_space<vmem>>, %arg3: memref<6x2xf32, #tpu.memory_space<vmem>>, %arg4: memref<6x1xf32, #tpu.memory_space<vmem>>, %arg5: memref<13x26xf32, #tpu.memory_space<vmem>>, %arg6: memref<13x26xf32, #tpu.memory_space<vmem>>, %arg7: memref<1x3x26xf32, #tpu.memory_space<vmem>>) attributes {dimension_semantics = [#tpu.dimension_semantics<parallel>, #tpu.dimension_semantics<parallel>], iteration_bounds = array<i64: 2, 1>, scalar_prefetch = 0 : i64, scratch_operands = 0 : i64, tpu.core_type = #tpu.core_type<tc>, window_params = [{transform_indices = @transform_0, window_bounds = array<i64: 1, 2, 13>}, {pipeline_mode = #tpu.pipeline_mode<synchronous>, transform_indices = @transform_1, window_bounds = array<i64: 6, 2>}, {pipeline_mode = #tpu.pipeline_mode<synchronous>, transform_indices = @transform_2, window_bounds = array<i64: 6, 1>}, {pipeline_mode = #tpu.pipeline_mode<synchronous>, transform_indices = @transform_3, window_bounds = array<i64: 13, 26>}, {pipeline_mode = #tpu.pipeline_mode<synchronous>, transform_indices = @transform_4, window_bounds = array<i64: 13, 26>}, {transform_indices = @transform_5, window_bounds = array<i64: 1, 3, 26>}]} {
    %c0 = arith.constant 0 : index
    %c0_0 = arith.constant 0 : index
    %0 = vector.load %arg3[%c0, %c0_0] : memref<6x2xf32, #tpu.memory_space<vmem>>, vector<6x2xf32>
    %c0_1 = arith.constant 0 : index
    %c0_2 = arith.constant 0 : index
    %1 = vector.load %arg4[%c0_1, %c0_2] : memref<6x1xf32, #tpu.memory_space<vmem>>, vector<6x1xf32>
    %c0_3 = arith.constant 0 : index
    %c0_4 = arith.constant 0 : index
    %2 = vector.load %arg5[%c0_3, %c0_4] : memref<13x26xf32, #tpu.memory_space<vmem>>, vector<13x26xf32>
    %c0_5 = arith.constant 0 : index
    %c0_6 = arith.constant 0 : index
    %3 = vector.load %arg6[%c0_5, %c0_6] : memref<13x26xf32, #tpu.memory_space<vmem>>, vector<13x26xf32>
    %c0_7 = arith.constant 0 : index
    %c0_8 = arith.constant 0 : index
    %c0_9 = arith.constant 0 : index
    %4 = vector.load %arg2[%c0_7, %c0_8, %c0_9] : memref<1x2x13xf32, #tpu.memory_space<vmem>>, vector<1x2x13xf32>
    %5 = vector.shape_cast %4 : vector<1x2x13xf32> to vector<2x13xf32>
    %cst = arith.constant dense<0.000000e+00> : vector<6x13xf32>
    %6 = tpu.matmul %0, %5, %cst {dimension_numbers = #tpu.dot_dimension_numbers<[1], [0], [0], [1], [0, 0, 1, 1], [], []>} : vector<6x2xf32>, vector<2x13xf32>, vector<6x13xf32> -> vector<6x13xf32>
    %7 = vector.broadcast %1 : vector<6x1xf32> to vector<6x13xf32>
    %8 = arith.addf %6, %7 : vector<6x13xf32>
    %9 = vector.extract_strided_slice %8 {offsets = [0, 0], sizes = [3, 13], strides = [1, 1]} : vector<6x13xf32> to vector<3x13xf32>
    %cst_10 = arith.constant dense<0.000000e+00> : vector<3x26xf32>
    %10 = tpu.matmul %9, %2, %cst_10 {dimension_numbers = #tpu.dot_dimension_numbers<[1], [0], [0], [1], [0, 0, 1, 1], [], []>} : vector<3x13xf32>, vector<13x26xf32>, vector<3x26xf32> -> vector<3x26xf32>
    %11 = vector.extract_strided_slice %8 {offsets = [3, 0], sizes = [3, 13], strides = [1, 1]} : vector<6x13xf32> to vector<3x13xf32>
    %cst_11 = arith.constant dense<0.000000e+00> : vector<3x26xf32>
    %12 = tpu.matmul %11, %3, %cst_11 {dimension_numbers = #tpu.dot_dimension_numbers<[1], [0], [0], [1], [0, 0, 1, 1], [], []>} : vector<3x13xf32>, vector<13x26xf32>, vector<3x26xf32> -> vector<3x26xf32>
    %13 = arith.addf %10, %12 : vector<3x26xf32>
    %c0_12 = arith.constant 0 : index
    %c0_13 = arith.constant 0 : index
    %c0_14 = arith.constant 0 : index
    %14 = vector.load %arg7[%c0_12, %c0_13, %c0_14] : memref<1x3x26xf32, #tpu.memory_space<vmem>>, vector<1x3x26xf32>
    %15 = vector.shape_cast %14 : vector<1x3x26xf32> to vector<3x26xf32>
    %16 = vector.shape_cast %13 : vector<3x26xf32> to vector<1x3x26xf32>
    tpu.vector_store %arg7[%c0_12, %c0_13, %c0_14], %16 {strides = array<i32>} : memref<1x3x26xf32, #tpu.memory_space<vmem>>, vector<1x3x26xf32>,
    return
  }
  func.func @transform_0(%arg0: i32, %arg1: i32) -> (i32, i32, i32) {
    %c0_i32 = arith.constant 0 : i32
    %c0_i32_0 = arith.constant 0 : i32
    return %arg0, %c0_i32, %arg1 : i32, i32, i32
  }
  func.func @transform_1(%arg0: i32, %arg1: i32) -> (i32, i32) {
    %c0_i32 = arith.constant 0 : i32
    %c0_i32_0 = arith.constant 0 : i32
    %c0_i32_1 = arith.constant 0 : i32
    return %c0_i32, %c0_i32_0 : i32, i32
  }
  func.func @transform_2(%arg0: i32, %arg1: i32) -> (i32, i32) {
    %c0_i32 = arith.constant 0 : i32
    %c0_i32_0 = arith.constant 0 : i32
    %c0_i32_1 = arith.constant 0 : i32
    return %c0_i32, %c0_i32_0 : i32, i32
  }
  func.func @transform_3(%arg0: i32, %arg1: i32) -> (i32, i32) {
    %c0_i32 = arith.constant 0 : i32
    %c0_i32_0 = arith.constant 0 : i32
    %c0_i32_1 = arith.constant 0 : i32
    return %c0_i32, %c0_i32_0 : i32, i32
  }
  func.func @transform_4(%arg0: i32, %arg1: i32) -> (i32, i32) {
    %c0_i32 = arith.constant 0 : i32
    %c0_i32_0 = arith.constant 0 : i32
    %c0_i32_1 = arith.constant 0 : i32
    return %c0_i32, %c0_i32_0 : i32, i32
  }
  func.func @transform_5(%arg0: i32, %arg1: i32) -> (i32, i32, i32) {
    %c0_i32 = arith.constant 0 : i32
    %c0_i32_0 = arith.constant 0 : i32
    return %arg0, %c0_i32, %arg1 : i32, i32, i32
  }
}

</mosaic_0001>

<llo_original>
// kernel: tpu_custom_call.1
$region0: #{tpu_custom_call.1}
  #allocation0 [shape = 'u32[]', space=smem, size = 0x4, offset = 0x4, fixed_abs, tag = 'smem constant byte address 0x4 - core index']
  #allocation1 [shape = 'u32[144,128]{1,0:T(1,128)}', space=vmem, size = 0x12000, scoped, tag = 'internal scratch']
  %s0 = inlined_call_operand.vmem [shape: f32[2,2,13], index: 0, kind: input, shape index: {}]
  %s1 = inlined_call_operand.vmem [shape: f32[6,2], index: 1, kind: input, shape index: {}]
  %s2 = inlined_call_operand.vmem [shape: f32[6,1], index: 2, kind: input, shape index: {}]
  %s3 = inlined_call_operand.vmem [shape: f32[13,26], index: 3, kind: input, shape index: {}]
  %s4 = inlined_call_operand.hbm [shape: f32[13,26], index: 4, kind: input, shape index: {}]
  %s5 = inlined_call_operand.vmem [shape: f32[2,3,26], index: 5, kind: output, shape index: {}]
  %s6 = sld [smem:[#allocation0]]
  $region57: #{tpu_custom_call.1} parent=0
    _
  %s8 = ssub.s32 1, %s6
  %s9 = scalar_select 0, %s8, %s6
  $region1: #{tpu_custom_call.1} parent=0
    #allocation2 [shape = 'u8[8192]{0}', space=vmem, size = 0x2000, scoped, tag = 'input window, operand 4, single buffered']
    #allocation3 [shape = 's32[2]{0}', space=sflag, size = 0x8, scoped, tag = 'scoped memory for tpu_custom_call.1']
    %10 = vsyncpa [#allocation3], 0
    loop: start=0, step=1, limit=4
    $region2: #{tpu_custom_call.1} parent=1 // loop_pre_header
      _
    $region3: #{tpu_custom_call.1} parent=1 // loop_header
      %s12 = sphi 0, %s16
      %p13 = scmp.ge.s32.totalorder %s12, 4
      %s19 = sphi 0, %s31
      %s20 = sphi 0, %s27
      %s21 = sphi 0, %s19
      %s22 = sphi 0, %s20
      %s23 = sphi 0, %s21
      %s24 = sphi 0, %s22
      %s36 = sphi 0, %s38
      %s39 = sphi 0, %s36
      %s40 = sphi 0, %s39
      %s56 = sphi 0, %s40
      %s60 = sphi 0, %s60
      %s62 = sphi 0, %s60
      %s63 = sphi 0, %s62
      %s77 = sphi 0, %s63
      %s81 = sphi 0, %s81
      %s83 = sphi 0, %s81
      %s84 = sphi 0, %s83
      %s98 = sphi 0, %s84
      %s102 = sphi 0, %s102
      %s104 = sphi 0, %s102
      %s105 = sphi 0, %s104
      %s119 = sphi 0, %s105
      %s123 = sphi 0, %s123
      %s125 = sphi 0, %s123
      %s126 = sphi 0, %s125
      %s140 = sphi 0, %s126
      %s148 = sphi 0, %s150
      %s151 = sphi 0, %s148
      %s152 = sphi 0, %s151
      %s168 = sphi 0, %s152
    $region4: #{tpu_custom_call.1} parent=1 // loop_header_branch
      %15 = sbr.rel (%p13) target = $region8
    $region5: #{tpu_custom_call.1} parent=1 // loop_body
      %s17 = ssub.s32 %s12, 1
      %s18 = ssub.s32 %s12, 2
      %s25 = sadd.s32 1, %s20
      %p26 = scmp.ge.s32.totalorder %s25, 1
      %s27 = scalar_select %p26, 0, %s25
      %s28 = sadd.s32 1, %s19
      %s29 = scalar_select %p26, %s28, %s19
      %p30 = scmp.ge.s32.totalorder %s29, 2
      %s31 = scalar_select %p30, 0, %s29
      %s32 = ssub.s32 %s19, %s31
      %s33 = ssub.s32 %s20, %s27
      %s34 = sor.u32 %s32, %s33
      %p35 = scmp.eq.s32.totalorder %s34, 0
      %s37 = sadd.s32 %s36, 1
      %s38 = scalar_select %p35, %s36, %s37
      %p41 = pneg %p35
      %p42 = scmp.eq.s32.totalorder %s12, 1
      %p43 = por %p41, %p42
      %p44 = scmp.ne.s32.totalorder %s36, %s39
      %p45 = scmp.eq.s32.totalorder %s12, 0
      %p46 = por %p44, %p45
      %p47 = scmp.ne.s32.totalorder %s36, %s39
      %p48 = scmp.eq.s32.totalorder %s17, 1
      %p49 = por %p47, %p48
      %p50 = scmp.ne.s32.totalorder %s39, %s40
      %p51 = scmp.eq.s32.totalorder %s17, 0
      %p52 = por %p50, %p51
      %p53 = scmp.ne.s32.totalorder %s39, %s40
      %p54 = scmp.eq.s32.totalorder %s18, 1
      %p55 = por %p53, %p54
      %p57 = scmp.ne.s32.totalorder %s40, %s56
      %p58 = scmp.eq.s32.totalorder %s18, 0
      %p59 = por %p57, %p58
      %s61 = sadd.s32 %s60, 1
      %p64 = scmp.eq.s32.totalorder %s12, 1
      %p65 = scmp.ne.s32.totalorder %s60, %s62
      %p66 = scmp.eq.s32.totalorder %s12, 0
      %p67 = por %p65, %p66
      %p68 = scmp.ne.s32.totalorder %s60, %s62
      %p69 = scmp.eq.s32.totalorder %s17, 1
      %p70 = por %p68, %p69
      %p71 = scmp.ne.s32.totalorder %s62, %s63
      %p72 = scmp.eq.s32.totalorder %s17, 0
      %p73 = por %p71, %p72
      %p74 = scmp.ne.s32.totalorder %s62, %s63
      %p75 = scmp.eq.s32.totalorder %s18, 1
      %p76 = por %p74, %p75
      %p78 = scmp.ne.s32.totalorder %s63, %s77
      %p79 = scmp.eq.s32.totalorder %s18, 0
      %p80 = por %p78, %p79
      %s82 = sadd.s32 %s81, 1
      %p85 = scmp.eq.s32.totalorder %s12, 1
      %p86 = scmp.ne.s32.totalorder %s81, %s83
      %p87 = scmp.eq.s32.totalorder %s12, 0
      %p88 = por %p86, %p87
      %p89 = scmp.ne.s32.totalorder %s81, %s83
      %p90 = scmp.eq.s32.totalorder %s17, 1
      %p91 = por %p89, %p90
      %p92 = scmp.ne.s32.totalorder %s83, %s84
      %p93 = scmp.eq.s32.totalorder %s17, 0
      %p94 = por %p92, %p93
      %p95 = scmp.ne.s32.totalorder %s83, %s84
      %p96 = scmp.eq.s32.totalorder %s18, 1
      %p97 = por %p95, %p96
      %p99 = scmp.ne.s32.totalorder %s84, %s98
      %p100 = scmp.eq.s32.totalorder %s18, 0
      %p101 = por %p99, %p100
      %s103 = sadd.s32 %s102, 1
      %p106 = scmp.eq.s32.totalorder %s12, 1
      %p107 = scmp.ne.s32.totalorder %s102, %s104
      %p108 = scmp.eq.s32.totalorder %s12, 0
      %p109 = por %p107, %p108
      %p110 = scmp.ne.s32.totalorder %s102, %s104
      %p111 = scmp.eq.s32.totalorder %s17, 1
      %p112 = por %p110, %p111
      %p113 = scmp.ne.s32.totalorder %s104, %s105
      %p114 = scmp.eq.s32.totalorder %s17, 0
      %p115 = por %p113, %p114
      %p116 = scmp.ne.s32.totalorder %s104, %s105
      %p117 = scmp.eq.s32.totalorder %s18, 1
      %p118 = por %p116, %p117
      %p120 = scmp.ne.s32.totalorder %s105, %s119
      %p121 = scmp.eq.s32.totalorder %s18, 0
      %p122 = por %p120, %p121
      %s124 = sadd.s32 %s123, 1
      %p127 = scmp.eq.s32.totalorder %s12, 1
      %p128 = scmp.ne.s32.totalorder %s123, %s125
      %p129 = scmp.eq.s32.totalorder %s12, 0
      %p130 = por %p128, %p129
      %p131 = scmp.ne.s32.totalorder %s123, %s125
      %p132 = scmp.eq.s32.totalorder %s17, 1
      %p133 = por %p131, %p132
      %p134 = scmp.ne.s32.totalorder %s125, %s126
      %p135 = scmp.eq.s32.totalorder %s17, 0
      %p136 = por %p134, %p135
      %p137 = scmp.ne.s32.totalorder %s125, %s126
      %p138 = scmp.eq.s32.totalorder %s18, 1
      %p139 = por %p137, %p138
      %p141 = scmp.ne.s32.totalorder %s126, %s140
      %p142 = scmp.eq.s32.totalorder %s18, 0
      %p143 = por %p141, %p142
      %s144 = ssub.s32 %s19, %s31
      %s145 = ssub.s32 %s20, %s27
      %s146 = sor.u32 %s144, %s145
      %p147 = scmp.eq.s32.totalorder %s146, 0
      %s149 = sadd.s32 %s148, 1
      %s150 = scalar_select %p147, %s148, %s149
      %p153 = pneg %p147
      %p154 = scmp.eq.s32.totalorder %s12, 1
      %p155 = por %p153, %p154
      %p156 = scmp.ne.s32.totalorder %s148, %s151
      %p157 = scmp.eq.s32.totalorder %s12, 0
      %p158 = por %p156, %p157
      %p159 = scmp.ne.s32.totalorder %s148, %s151
      %p160 = scmp.eq.s32.totalorder %s17, 1
      %p161 = por %p159, %p160
      %p162 = scmp.ne.s32.totalorder %s151, %s152
      %p163 = scmp.eq.s32.totalorder %s17, 0
      %p164 = por %p162, %p163
      %p165 = scmp.ne.s32.totalorder %s151, %s152
      %p166 = scmp.eq.s32.totalorder %s18, 1
      %p167 = por %p165, %p166
      %p169 = scmp.ne.s32.totalorder %s152, %s168
      %p170 = scmp.eq.s32.totalorder %s18, 0
      %p171 = por %p169, %p170
      %p172 = scmp.le.s32.totalorder 1, %s12
      %p173 = scmp.lt.s32.totalorder %s12, 3
      %p174 = pnand %p172, %p173
      %p175 = pneg %p174
      // Predicated region
      $region9: #{tpu_custom_call.1} parent=5 // pred_check
        _
      $region10: #{tpu_custom_call.1} parent=5 // pred_check_branch
        %177 = sbr.rel (%p174) target = $region12
      $region11: #{tpu_custom_call.1} parent=5 // pred_region
        %s178 = ssub.s32 %s12, 1
        // Predicated region
        $region13: #{tpu_custom_call.1} parent=11 // pred_check
          %p179 = pneg %p73
        $region14: #{tpu_custom_call.1} parent=11 // pred_check_branch
          %181 = sbr.rel (%p179) target = $region16
        $region15: #{tpu_custom_call.1} parent=11 // pred_region
          _
        $region16: #{tpu_custom_call.1} parent=11 // pred_fallthru
          _
        // Predicated region
        $region17: #{tpu_custom_call.1} parent=11 // pred_check
          %p182 = pneg %p94
        $region18: #{tpu_custom_call.1} parent=11 // pred_check_branch
          %184 = sbr.rel (%p182) target = $region20
        $region19: #{tpu_custom_call.1} parent=11 // pred_region
          _
        $region20: #{tpu_custom_call.1} parent=11 // pred_fallthru
          _
        // Predicated region
        $region21: #{tpu_custom_call.1} parent=11 // pred_check
          %p185 = pneg %p115
        $region22: #{tpu_custom_call.1} parent=11 // pred_check_branch
          %187 = sbr.rel (%p185) target = $region24
        $region23: #{tpu_custom_call.1} parent=11 // pred_region
          _
        $region24: #{tpu_custom_call.1} parent=11 // pred_fallthru
          _
        // Predicated region
        $region25: #{tpu_custom_call.1} parent=11 // pred_check
          %p188 = pneg %p136
        $region26: #{tpu_custom_call.1} parent=11 // pred_check_branch
          %190 = sbr.rel (%p188) target = $region28
        $region27: #{tpu_custom_call.1} parent=11 // pred_region
          %s192 = ssub.s32 256, 256
          %193 = vsyncadd [#allocation3], %s192
          %s194 = sshll.u32 [#allocation2], 4
          %s195 = int_to_ptr.vmem [resolvable:$true] %s194
          %200 = dma.hbm_to_vmem [thread:$0]  %s4, 256, %s195, [#allocation3], 128, 128, 8
        $region28: #{tpu_custom_call.1} parent=11 // pred_fallthru
          _
      $region12: #{tpu_custom_call.1} parent=5 // pred_fallthru
        _
      %p201 = scmp.lt.s32.totalorder %s12, 2
      // Predicated region
      $region29: #{tpu_custom_call.1} parent=5 // pred_check
        %p202 = pneg %p201
      $region30: #{tpu_custom_call.1} parent=5 // pred_check_branch
        %204 = sbr.rel (%p202) target = $region32
      $region31: #{tpu_custom_call.1} parent=5 // pred_region
        // Predicated region
        $region33: #{tpu_custom_call.1} parent=31 // pred_check
          %p205 = pneg %p46
        $region34: #{tpu_custom_call.1} parent=31 // pred_check_branch
          %207 = sbr.rel (%p205) target = $region36
        $region35: #{tpu_custom_call.1} parent=31 // pred_region
          %p208 = scmp.lt.s32.totalorder %s19, 1
          %s209 = scalar_select %p208, %s19, 1
          %p210 = scmp.lt.s32.totalorder %s20, 0
          %s211 = scalar_select %p210, %s20, 0
          %s212 = sadd.s32 %s211, %s209
          %s213 = smul.addr %s212, 2
          %s214 = scalar_lea.vmem %s0, %s213
        $region36: #{tpu_custom_call.1} parent=31 // pred_fallthru
          _
      $region32: #{tpu_custom_call.1} parent=5 // pred_fallthru
        _
      %p215 = scmp.le.s32.totalorder 1, %s12
      %p216 = scmp.lt.s32.totalorder %s12, 3
      %p217 = pnand %p215, %p216
      %p218 = pneg %p217
      // Predicated region
      $region37: #{tpu_custom_call.1} parent=5 // pred_check
        _
      $region38: #{tpu_custom_call.1} parent=5 // pred_check_branch
        %220 = sbr.rel (%p217) target = $region40
      $region39: #{tpu_custom_call.1} parent=5 // pred_region
        %s221 = ssub.s32 %s12, 1
        // Predicated region
        $region41: #{tpu_custom_call.1} parent=39 // pred_check
          %p222 = pneg %p136
        $region42: #{tpu_custom_call.1} parent=39 // pred_check_branch
          %224 = sbr.rel (%p222) target = $region44
        $region43: #{tpu_custom_call.1} parent=39 // pred_region
          %225 = dma.done [#allocation3], 256
        $region44: #{tpu_custom_call.1} parent=39 // pred_fallthru
          _
        %p226 = scmp.lt.s32.totalorder %s21, 1
        %s227 = scalar_select %p226, %s21, 1
        %p228 = scmp.lt.s32.totalorder %s22, 0
        %s229 = scalar_select %p228, %s22, 0
        %s230 = sadd.s32 %s229, %s227
        %s231 = smul.addr %s230, 2
        %s232 = scalar_lea.vmem %s0, %s231
        %p233 = pneg %p52
        %p234 = pneg %p49
        %p235 = pneg %p73
        %p236 = pneg %p70
        %p237 = pneg %p94
        %p238 = pneg %p91
        %p239 = pneg %p115
        %p240 = pneg %p112
        %p241 = pneg %p136
        %p242 = pneg %p133
        %p243 = pneg %p164
        %p244 = pneg %p161
        %p245 = scmp.lt.s32.totalorder %s21, 1
        %s246 = scalar_select %p245, %s21, 1
        %p247 = scmp.lt.s32.totalorder %s22, 0
        %s248 = scalar_select %p247, %s22, 0
        %s249 = sadd.s32 %s248, %s246
        %s250 = smul.addr %s249, 4
        %s251 = scalar_lea.vmem %s5, %s250
        %p252 = scmp.lt.s32.totalorder %s21, 1
        %s253 = scalar_select %p252, %s21, 1
        %p254 = scmp.lt.s32.totalorder %s22, 0
        %s255 = scalar_select %p254, %s22, 0
        %s256 = sadd.s32 %s255, %s253
        %s257 = smul.addr %s256, 2
        %s258 = scalar_lea.vmem %s0, %s257
        %p259 = scmp.lt.s32.totalorder %s21, 1
        %s260 = scalar_select %p259, %s21, 1
        %p261 = scmp.lt.s32.totalorder %s22, 0
        %s262 = scalar_select %p261, %s22, 0
        %s263 = sadd.s32 %s262, %s260
        %s264 = smul.addr %s263, 4
        %s265 = scalar_lea.vmem %s5, %s264
        %v266 = vld [vmem:[%s1] sm:$0x3f]
        %v267 = vld [vmem:[%s2] sm:$0x3f]
        %v268 = vld [vmem:[%s3] sm:$0xff]
        %v269 = vld [vmem:[%s3 + $0x8] sm:$0x1f]
        %v270 = vld [vmem:[#allocation2] sm:$0xff]
        %v271 = vld [vmem:[#allocation2 + $0x8] sm:$0x1f]
        %v272 = vld [vmem:[%s258] sm:$0x3]
        %274 = vset.pattern.permute.xlu0 0
        %275 = vperm.xlu0 %274, %v267
        %v276 = vpop.permute.xlu0 %275
        %vm278 = vcmask 15360
        %v280 = vsel %vm278, %v266, 0
        %vm282 = vcmask 1041408
        %v284 = vsel %vm282, %v272, 0
        %286 = vmatprep.subr.mxu0 0.0
        %287 = vmatpush1.msra.mxu0 0.0
        %288 = vmatprep.subr.mxu0 0.0
        %289 = vmatpush1.msra.mxu0 0.0
        %290 = vmatprep.subr.mxu0 0.0
        %291 = vmatpush1.msra.mxu0 0.0
        %292 = vmatprep.subr.mxu0 0.0
        %293 = vmatpush1.msra.mxu0 0.0
        %294 = vmatprep.subr.mxu0 0.0
        %295 = vmatpush1.msra.mxu0 0.0
        %296 = vmatprep.subr.mxu0 0.0
        %297 = vmatpush1.msra.mxu0 0.0
        %298 = vmatprep.subr.mxu0 0.0
        %299 = vmatpush1.msra.mxu0 0.0
        %300 = vmatprep.subr.mxu0 0.0
        %301 = vmatpush1.msra.mxu0 0.0
        %302 = vmatprep.subr.mxu0 0.0
        %303 = vmatpush1.msra.mxu0 0.0
        %304 = vmatprep.subr.mxu0 0.0
        %305 = vmatpush1.msra.mxu0 0.0
        %306 = vmatprep.subr.mxu0 0.0
        %307 = vmatpush1.msra.mxu0 0.0
        %308 = vmatprep.subr.mxu0 0.0
        %309 = vmatpush1.msra.mxu0 0.0
        %310 = vmatprep.subr.mxu0 0.0
        %311 = vmatpush1.msra.mxu0 0.0
        %312 = vmatprep.subr.mxu0 0.0
        %313 = vmatpush1.msra.mxu0 0.0
        %314 = vmatprep.subr.mxu0 0.0
        %315 = vmatpush1.msra.mxu0 0.0
        %316 = vmatprep.subr.mxu0 0.0
        %317 = vmatpush1.msra.mxu0 %v284
        %318 = vmatprep.subr.mxu0 0.0
        %319 = vmatpush2.msra.mxu0 0.0
        %320 = vmatprep.subr.mxu0 0.0
        %321 = vmatpush2.msra.mxu0 0.0
        %322 = vmatprep.subr.mxu0 0.0
        %323 = vmatpush2.msra.mxu0 0.0
        %324 = vmatprep.subr.mxu0 0.0
        %325 = vmatpush2.msra.mxu0 0.0
        %326 = vmatprep.subr.mxu0 0.0
        %327 = vmatpush2.msra.mxu0 0.0
        %328 = vmatprep.subr.mxu0 0.0
        %329 = vmatpush2.msra.mxu0 0.0
        %330 = vmatprep.subr.mxu0 0.0
        %331 = vmatpush2.msra.mxu0 0.0
        %332 = vmatprep.subr.mxu0 0.0
        %333 = vmatpush2.msra.mxu0 0.0
        %334 = vmatprep.subr.mxu0 0.0
        %335 = vmatpush2.msra.mxu0 0.0
        %336 = vmatprep.subr.mxu0 0.0
        %337 = vmatpush2.msra.mxu0 0.0
        %338 = vmatprep.subr.mxu0 0.0
        %339 = vmatpush2.msra.mxu0 0.0
        %340 = vmatprep.subr.mxu0 0.0
        %341 = vmatpush2.msra.mxu0 0.0
        %342 = vmatprep.subr.mxu0 0.0
        %343 = vmatpush2.msra.mxu0 0.0
        %344 = vmatprep.subr.mxu0 0.0
        %345 = vmatpush2.msra.mxu0 0.0
        %346 = vmatprep.subr.mxu0 0.0
        %347 = vmatpush2.msra.mxu0 0.0
        %348 = vmatprep.subr.mxu0 0.0
        %349 = vmatpush2.msra.mxu0 0.0
        %350 = vmatprep.mubr.f32.mxu0 0.0
        %351 = vmatmul.mubr.f32.gmra.mxu0 %v280
        %v352 = vpop.f32.mrf.mxu0
        %v353 = vadd.f32 %v276, %v352
        %v354 = vpop.f32.mrf.mxu0
        %355 = vdwg.mxu0
        %v357 = vrot.slane %v353, 3
        %vm358 = vcmask 105472
        %v359 = vsel %vm358, %v357, 0
        %vm361 = vcmask 1044480
        %v363 = vsel %vm361, %v271, 0
        %365 = vmatprep.subr.mxu0 0.0
        %366 = vmatpush1.msra.mxu0 0.0
        %367 = vmatprep.subr.mxu0 0.0
        %368 = vmatpush1.msra.mxu0 0.0
        %369 = vmatprep.subr.mxu0 0.0
        %370 = vmatpush1.msra.mxu0 0.0
        %371 = vmatprep.subr.mxu0 0.0
        %372 = vmatpush1.msra.mxu0 0.0
        %373 = vmatprep.subr.mxu0 0.0
        %374 = vmatpush1.msra.mxu0 0.0
        %375 = vmatprep.subr.mxu0 0.0
        %376 = vmatpush1.msra.mxu0 0.0
        %377 = vmatprep.subr.mxu0 0.0
        %378 = vmatpush1.msra.mxu0 0.0
        %379 = vmatprep.subr.mxu0 0.0
        %380 = vmatpush1.msra.mxu0 0.0
        %381 = vmatprep.subr.mxu0 0.0
        %382 = vmatpush1.msra.mxu0 0.0
        %383 = vmatprep.subr.mxu0 0.0
        %384 = vmatpush1.msra.mxu0 0.0
        %385 = vmatprep.subr.mxu0 0.0
        %386 = vmatpush1.msra.mxu0 0.0
        %387 = vmatprep.subr.mxu0 0.0
        %388 = vmatpush1.msra.mxu0 0.0
        %389 = vmatprep.subr.mxu0 0.0
        %390 = vmatpush1.msra.mxu0 0.0
        %391 = vmatprep.subr.mxu0 0.0
        %392 = vmatpush1.msra.mxu0 0.0
        %393 = vmatprep.subr.mxu0 0.0
        %394 = vmatpush1.msra.mxu0 %v363
        %395 = vmatprep.subr.mxu0 0.0
        %396 = vmatpush1.msra.mxu0 %v270
        %397 = vmatprep.subr.mxu0 0.0
        %398 = vmatpush2.msra.mxu0 0.0
        %399 = vmatprep.subr.mxu0 0.0
        %400 = vmatpush2.msra.mxu0 0.0
        %401 = vmatprep.subr.mxu0 0.0
        %402 = vmatpush2.msra.mxu0 0.0
        %403 = vmatprep.subr.mxu0 0.0
        %404 = vmatpush2.msra.mxu0 0.0
        %405 = vmatprep.subr.mxu0 0.0
        %406 = vmatpush2.msra.mxu0 0.0
        %407 = vmatprep.subr.mxu0 0.0
        %408 = vmatpush2.msra.mxu0 0.0
        %409 = vmatprep.subr.mxu0 0.0
        %410 = vmatpush2.msra.mxu0 0.0
        %411 = vmatprep.subr.mxu0 0.0
        %412 = vmatpush2.msra.mxu0 0.0
        %413 = vmatprep.subr.mxu0 0.0
        %414 = vmatpush2.msra.mxu0 0.0
        %415 = vmatprep.subr.mxu0 0.0
        %416 = vmatpush2.msra.mxu0 0.0
        %417 = vmatprep.subr.mxu0 0.0
        %418 = vmatpush2.msra.mxu0 0.0
        %419 = vmatprep.subr.mxu0 0.0
        %420 = vmatpush2.msra.mxu0 0.0
        %421 = vmatprep.subr.mxu0 0.0
        %422 = vmatpush2.msra.mxu0 0.0
        %423 = vmatprep.subr.mxu0 0.0
        %424 = vmatpush2.msra.mxu0 0.0
        %425 = vmatprep.subr.mxu0 0.0
        %426 = vmatpush2.msra.mxu0 0.0
        %427 = vmatprep.subr.mxu0 0.0
        %428 = vmatpush2.msra.mxu0 0.0
        %429 = vmatprep.mubr.f32.mxu0 0.0
        %430 = vmatmul.mubr.f32.gmra.mxu0 %v359
        %v431 = vpop.f32.mrf.mxu0
        %v432 = vadd.f32 0.0, %v431
        %v433 = vpop.f32.mrf.mxu0
        %434 = vdwg.mxu0
        %v435 = vsel %vm358, %v353, 0
        %v438 = vsel %vm361, %v269, 0
        %440 = vmatprep.subr.mxu0 0.0
        %441 = vmatpush1.msra.mxu0 0.0
        %442 = vmatprep.subr.mxu0 0.0
        %443 = vmatpush1.msra.mxu0 0.0
        %444 = vmatprep.subr.mxu0 0.0
        %445 = vmatpush1.msra.mxu0 0.0
        %446 = vmatprep.subr.mxu0 0.0
        %447 = vmatpush1.msra.mxu0 0.0
        %448 = vmatprep.subr.mxu0 0.0
        %449 = vmatpush1.msra.mxu0 0.0
        %450 = vmatprep.subr.mxu0 0.0
        %451 = vmatpush1.msra.mxu0 0.0
        %452 = vmatprep.subr.mxu0 0.0
        %453 = vmatpush1.msra.mxu0 0.0
        %454 = vmatprep.subr.mxu0 0.0
        %455 = vmatpush1.msra.mxu0 0.0
        %456 = vmatprep.subr.mxu0 0.0
        %457 = vmatpush1.msra.mxu0 0.0
        %458 = vmatprep.subr.mxu0 0.0
        %459 = vmatpush1.msra.mxu0 0.0
        %460 = vmatprep.subr.mxu0 0.0
        %461 = vmatpush1.msra.mxu0 0.0
        %462 = vmatprep.subr.mxu0 0.0
        %463 = vmatpush1.msra.mxu0 0.0
        %464 = vmatprep.subr.mxu0 0.0
        %465 = vmatpush1.msra.mxu0 0.0
        %466 = vmatprep.subr.mxu0 0.0
        %467 = vmatpush1.msra.mxu0 0.0
        %468 = vmatprep.subr.mxu0 0.0
        %469 = vmatpush1.msra.mxu0 %v438
        %470 = vmatprep.subr.mxu0 0.0
        %471 = vmatpush1.msra.mxu0 %v268
        %472 = vmatprep.subr.mxu0 0.0
        %473 = vmatpush2.msra.mxu0 0.0
        %474 = vmatprep.subr.mxu0 0.0
        %475 = vmatpush2.msra.mxu0 0.0
        %476 = vmatprep.subr.mxu0 0.0
        %477 = vmatpush2.msra.mxu0 0.0
        %478 = vmatprep.subr.mxu0 0.0
        %479 = vmatpush2.msra.mxu0 0.0
        %480 = vmatprep.subr.mxu0 0.0
        %481 = vmatpush2.msra.mxu0 0.0
        %482 = vmatprep.subr.mxu0 0.0
        %483 = vmatpush2.msra.mxu0 0.0
        %484 = vmatprep.subr.mxu0 0.0
        %485 = vmatpush2.msra.mxu0 0.0
        %486 = vmatprep.subr.mxu0 0.0
        %487 = vmatpush2.msra.mxu0 0.0
        %488 = vmatprep.subr.mxu0 0.0
        %489 = vmatpush2.msra.mxu0 0.0
        %490 = vmatprep.subr.mxu0 0.0
        %491 = vmatpush2.msra.mxu0 0.0
        %492 = vmatprep.subr.mxu0 0.0
        %493 = vmatpush2.msra.mxu0 0.0
        %494 = vmatprep.subr.mxu0 0.0
        %495 = vmatpush2.msra.mxu0 0.0
        %496 = vmatprep.subr.mxu0 0.0
        %497 = vmatpush2.msra.mxu0 0.0
        %498 = vmatprep.subr.mxu0 0.0
        %499 = vmatpush2.msra.mxu0 0.0
        %500 = vmatprep.subr.mxu0 0.0
        %501 = vmatpush2.msra.mxu0 0.0
        %502 = vmatprep.subr.mxu0 0.0
        %503 = vmatpush2.msra.mxu0 0.0
        %504 = vmatprep.mubr.f32.mxu0 0.0
        %505 = vmatmul.mubr.f32.gmra.mxu0 %v435
        %v506 = vpop.f32.mrf.mxu0
        %v507 = vadd.f32 %v432, %v506
        %v508 = vpop.f32.mrf.mxu0
        %509 = vdwg.mxu0
        %vm510 = vcmask 206848
        %511 = vst.msk [vmem:[%s265] sm:$0x7] %vm510, %v507
        %p512 = scmp.lt.s32.totalorder %s21, 1
        %s513 = scalar_select %p512, %s21, 1
        %p514 = scmp.lt.s32.totalorder %s22, 0
        %s515 = scalar_select %p514, %s22, 0
        %s516 = sadd.s32 %s515, %s513
        %s517 = smul.addr %s516, 4
        %s518 = scalar_lea.vmem %s5, %s517
        // Predicated region
        $region45: #{tpu_custom_call.1} parent=39 // pred_check
          %p519 = pneg %p161
        $region46: #{tpu_custom_call.1} parent=39 // pred_check_branch
          %521 = sbr.rel (%p519) target = $region48
        $region47: #{tpu_custom_call.1} parent=39 // pred_region
          _
        $region48: #{tpu_custom_call.1} parent=39 // pred_fallthru
          _
      $region40: #{tpu_custom_call.1} parent=5 // pred_fallthru
        _
      %p522 = scmp.le.s32.totalorder 2, %s12
      // Predicated region
      $region49: #{tpu_custom_call.1} parent=5 // pred_check
        %p523 = pneg %p522
      $region50: #{tpu_custom_call.1} parent=5 // pred_check_branch
        %525 = sbr.rel (%p523) target = $region52
      $region51: #{tpu_custom_call.1} parent=5 // pred_region
        %s526 = ssub.s32 %s12, 2
        // Predicated region
        $region53: #{tpu_custom_call.1} parent=51 // pred_check
          %p527 = pneg %p167
        $region54: #{tpu_custom_call.1} parent=51 // pred_check_branch
          %529 = sbr.rel (%p527) target = $region56
        $region55: #{tpu_custom_call.1} parent=51 // pred_region
          %p530 = scmp.lt.s32.totalorder %s23, 1
          %s531 = scalar_select %p530, %s23, 1
          %p532 = scmp.lt.s32.totalorder %s24, 0
          %s533 = scalar_select %p532, %s24, 0
          %s534 = sadd.s32 %s533, %s531
          %s535 = smul.addr %s534, 4
          %s536 = scalar_lea.vmem %s5, %s535
        $region56: #{tpu_custom_call.1} parent=51 // pred_fallthru
          _
      $region52: #{tpu_custom_call.1} parent=5 // pred_fallthru
        _
    $region6: #{tpu_custom_call.1} parent=1 // loop_footer
      %s16 = sadd.s32 1, %s12
    $region7: #{tpu_custom_call.1} parent=1 // loop_footer_branch
      %11 = sbr.rel target = $region3
    $region8: #{tpu_custom_call.1} parent=1 // loop_exit
      _
    %537 = vsyncpa [#allocation3], 1
    %s538 = scalar_lea.sflag [#allocation3], 1
    %539 = vsyncpa %s538, 1

</llo_original>
